<compile_context>
chip_gen: v7x
topology: tpu7x:2x2x1
jax: 0.10.0
libtpu: 0.0.40
codegen_flags: <defaults>
</compile_context>

<pallas_src>
import jax
import jax.numpy as jnp
from jax.experimental import pallas as pl
from jax.experimental.pallas import tpu as pltpu

BN_EPS = 1e-5
_LANE = 128
_DEFAULT_BLOCK_N = 8192  # lanes (batch rows) per grid step


def _round_up(x: int, m: int) -> int:
    return ((x + m - 1) // m) * m


# --------------------------------------------------------------------------
# Phase 1: per-feature batch sums (for BatchNorm statistics).
# x is feature-major (8, N_pad); grid iterates over lane blocks and
# accumulates into a resident (8, 1) sum / sum-of-squares output block.
# --------------------------------------------------------------------------
def _stats_kernel(x_ref, sum_ref, sq_ref):
    @pl.when(pl.program_id(0) == 0)
    def _():
        sum_ref[...] = jnp.zeros_like(sum_ref)
        sq_ref[...] = jnp.zeros_like(sq_ref)

    xb = x_ref[...]                                        # (8, bn) f32, lane-dense
    sum_ref[...] += jnp.sum(xb, axis=1, keepdims=True)     # (8, 1)
    sq_ref[...] += jnp.sum(xb * xb, axis=1, keepdims=True)  # (8, 1)


# --------------------------------------------------------------------------
# Phase 2: BN normalize (folded into scale/shift) + 4-layer MLP.
# All intermediates are (out_features, bn): batch on the lane axis.
# --------------------------------------------------------------------------
def _make_mlp_kernel(n_valid: int):
    inv_n = 1.0 / float(n_valid)

    def kernel(x_ref, sum_ref, sq_ref, gamma_ref, beta_ref,
               w1_ref, b1_ref, w2_ref, b2_ref,
               w3_ref, b3_ref, w4_ref, b4_ref, o_ref):
        # ---- BatchNorm1d (training mode: batch mean, biased variance) ----
        mean = sum_ref[...] * inv_n                         # (8, 1)
        ex2 = sq_ref[...] * inv_n
        var = jnp.maximum(ex2 - mean * mean, 0.0)           # E[x^2] - E[x]^2
        scale = gamma_ref[...] * jax.lax.rsqrt(var + BN_EPS)
        shift = beta_ref[...] - mean * scale

        x = x_ref[...]                                      # (8, bn)
        h = x * scale + shift                               # lane-dense VPU

        # ---- Linear layers (W @ x + b), tanh on lane-dense tiles ----
        h = jnp.tanh(jnp.dot(w1_ref[...], h,
                             preferred_element_type=jnp.float32) + b1_ref[...])   # (10, bn)
        h = jnp.tanh(jnp.dot(w2_ref[...], h,
                             preferred_element_type=jnp.float32) + b2_ref[...])   # (20, bn)
        h = jnp.tanh(jnp.dot(w3_ref[...], h,
                             preferred_element_type=jnp.float32) + b3_ref[...])   # (10, bn)
        # Final Linear(10, 1): tiny matmul -> lane-dense (1, bn) output slab.
        o_ref[...] = jnp.dot(w4_ref[...], h,
                             preferred_element_type=jnp.float32) + b4_ref[...]

    return kernel


def model_forward(x, params, block_n=None):
    """x: (N, 8) array (any float dtype). params: dict of gamma/beta/W/b."""
    n, f = x.shape
    assert f == 8, f

    if block_n is None:
        block_n = min(_DEFAULT_BLOCK_N, _round_up(n, _LANE))
    block_n = _round_up(block_n, _LANE)
    n_pad = _round_up(n, block_n)
    grid = n_pad // block_n

    # Single wrapper-side copy: cast + transpose to feature-major + zero-pad
    # the lane (batch) axis up to a block multiple.  Zero columns keep the
    # batch sums exact (we divide by the true N), so no in-kernel masking.
    xt = jnp.pad(jnp.transpose(x.astype(jnp.float32)), ((0, 0), (0, n_pad - n)))

    x_spec = pl.BlockSpec((f, block_n), lambda i: (0, i))
    stat_spec = pl.BlockSpec((f, 1), lambda i: (0, 0))

    # ---- Phase 1: batch statistics (reduction over blocks -> "arbitrary") ----
    sums, sqs = pl.pallas_call(
        _stats_kernel,
        out_shape=(jax.ShapeDtypeStruct((f, 1), jnp.float32),
                   jax.ShapeDtypeStruct((f, 1), jnp.float32)),
        grid=(grid,),
        in_specs=[x_spec],
        out_specs=(stat_spec, stat_spec),
        compiler_params=pltpu.CompilerParams(
            dimension_semantics=("arbitrary",)),
    )(xt)

    # ---- Phase 2: normalize + MLP (independent blocks -> "parallel") ----
    p_args = (sums, sqs, params["gamma"], params["beta"],
              params["w1"], params["b1"], params["w2"], params["b2"],
              params["w3"], params["b3"], params["w4"], params["b4"])
    p_specs = [pl.BlockSpec(p.shape, lambda i: (0, 0)) for p in p_args]

    out = pl.pallas_call(
        _make_mlp_kernel(n),
        out_shape=jax.ShapeDtypeStruct((1, n_pad), jnp.float32),
        grid=(grid,),
        in_specs=[x_spec] + p_specs,
        out_specs=pl.BlockSpec((1, block_n), lambda i: (0, i)),
        compiler_params=pltpu.CompilerParams(
            dimension_semantics=("parallel",)),
    )(xt, *p_args)

    # (1, N_pad) -> (N, 1); slicing/reshaping a width-1 slab is free.
    return out[0, :n][:, None]


def init_params():
    """Deterministic synthetic parameters, stored feature-major: W=(out,in), b=(out,1)."""
    key = jax.random.PRNGKey(42)
    ks = jax.random.split(key, 8)

    def lin(kw, kb, fan_in, fan_out):
        w = (jax.random.normal(kw, (fan_out, fan_in), jnp.float32)
             * (1.0 / jnp.sqrt(fan_in)))
        b = jax.random.normal(kb, (fan_out, 1), jnp.float32) * 0.01
        return w, b

    w1, b1 = lin(ks[0], ks[1], 8, 10)
    w2, b2 = lin(ks[2], ks[3], 10, 20)
    w3, b3 = lin(ks[4], ks[5], 20, 10)
    w4, b4 = lin(ks[6], ks[7], 10, 1)

    return {
        "gamma": jnp.ones((8, 1), jnp.float32),   # BatchNorm1d weight init
        "beta": jnp.zeros((8, 1), jnp.float32),   # BatchNorm1d bias init
        "w1": w1, "b1": b1,
        "w2": w2, "b2": b2,
        "w3": w3, "b3": b3,
        "w4": w4, "b4": b4,
    }


def _reference_forward(x, p):
    """Plain-JAX reference matching the PyTorch module (training-mode BN)."""
    x = x.astype(jnp.float32)
    mean = jnp.mean(x, axis=0, keepdims=True)
    var = jnp.mean((x - mean) ** 2, axis=0, keepdims=True)
    h = (x - mean) / jnp.sqrt(var + BN_EPS) * p["gamma"].T + p["beta"].T
    h = jnp.tanh(h @ p["w1"].T + p["b1"].T)
    h = jnp.tanh(h @ p["w2"].T + p["b2"].T)
    h = jnp.tanh(h @ p["w3"].T + p["b3"].T)
    return h @ p["w4"].T + p["b4"].T


if __name__ == "__main__":
    params = init_params()

    # Small batch (exercises lane padding 8 -> 128, single grid step).
    x_small = jax.random.normal(jax.random.PRNGKey(0), (8, 8), jnp.float32)
    out_small = jax.block_until_ready(model_forward(x_small, params))
    ref_small = _reference_forward(x_small, params)
    assert out_small.shape == (8, 1), out_small.shape
    assert jnp.allclose(out_small, ref_small, atol=2e-5, rtol=2e-5)

    # Ragged batch with a multi-block grid (exercises stats accumulation
    # across grid steps and the "parallel" MLP phase).
    x_big = jax.random.normal(jax.random.PRNGKey(1), (300, 8), jnp.float32)
    out_big = jax.block_until_ready(model_forward(x_big, params, block_n=128))
    ref_big = _reference_forward(x_big, params)
    assert out_big.shape == (300, 1), out_big.shape
    assert jnp.allclose(out_big, ref_big, atol=2e-5, rtol=2e-5)

    print("KERNEL_OK")
</pallas_src>

<mosaic_0001>
module attributes {stable_mosaic.version = 11 : i64} {
  func.func @_stats_kernel(%arg0: i32, %arg1: memref<8x128xf32, #tpu.memory_space<vmem>>, %arg2: memref<8x1xf32, #tpu.memory_space<vmem>>, %arg3: memref<8x1xf32, #tpu.memory_space<vmem>>) attributes {dimension_semantics = [#tpu.dimension_semantics<arbitrary>], iteration_bounds = array<i64: 1>, scalar_prefetch = 0 : i64, scratch_operands = 0 : i64, tpu.core_type = #tpu.core_type<tc>, window_params = [{transform_indices = @transform_0, window_bounds = array<i64: 8, 128>}, {pipeline_mode = #tpu.pipeline_mode<synchronous>, transform_indices = @transform_1, window_bounds = array<i64: 8, 1>}, {pipeline_mode = #tpu.pipeline_mode<synchronous>, transform_indices = @transform_2, window_bounds = array<i64: 8, 1>}]} {
    %c0_i32 = arith.constant 0 : i32
    %0 = arith.cmpi eq, %arg0, %c0_i32 : i32
    %1 = arith.extui %0 : i1 to i32
    %c0_i32_0 = arith.constant 0 : i32
    %2 = arith.cmpi ne, %1, %c0_i32_0 : i32
    scf.if %2 {
      %cst_11 = arith.constant 0.000000e+00 : f32
      %15 = vector.broadcast %cst_11 : f32 to vector<8x1xf32>
      %c0_12 = arith.constant 0 : index
      %c0_13 = arith.constant 0 : index
      %16 = vector.load %arg2[%c0_12, %c0_13] : memref<8x1xf32, #tpu.memory_space<vmem>>, vector<8x1xf32>
      tpu.vector_store %arg2[%c0_12, %c0_13], %15 {strides = array<i32>} : memref<8x1xf32, #tpu.memory_space<vmem>>, vector<8x1xf32>,
      %cst_14 = arith.constant 0.000000e+00 : f32
      %17 = vector.broadcast %cst_14 : f32 to vector<8x1xf32>
      %c0_15 = arith.constant 0 : index
      %c0_16 = arith.constant 0 : index
      %18 = vector.load %arg3[%c0_15, %c0_16] : memref<8x1xf32, #tpu.memory_space<vmem>>, vector<8x1xf32>
      tpu.vector_store %arg3[%c0_15, %c0_16], %17 {strides = array<i32>} : memref<8x1xf32, #tpu.memory_space<vmem>>, vector<8x1xf32>,
    } else {
    }
    %c0 = arith.constant 0 : index
    %c0_1 = arith.constant 0 : index
    %3 = vector.load %arg1[%c0, %c0_1] : memref<8x128xf32, #tpu.memory_space<vmem>>, vector<8x128xf32>
    %c0_2 = arith.constant 0 : index
    %c0_3 = arith.constant 0 : index
    %4 = vector.load %arg2[%c0_2, %c0_3] : memref<8x1xf32, #tpu.memory_space<vmem>>, vector<8x1xf32>
    %cst = arith.constant dense<0.000000e+00> : vector<8xf32>
    %5 = vector.multi_reduction <add>, %3, %cst [1] : vector<8x128xf32> to vector<8xf32>
    %6 = vector.shape_cast %5 : vector<8xf32> to vector<8x1xf32>
    %7 = arith.addf %4, %6 : vector<8x1xf32>
    %c0_4 = arith.constant 0 : index
    %c0_5 = arith.constant 0 : index
    %8 = vector.load %arg2[%c0_4, %c0_5] : memref<8x1xf32, #tpu.memory_space<vmem>>, vector<8x1xf32>
    tpu.vector_store %arg2[%c0_4, %c0_5], %7 {strides = array<i32>} : memref<8x1xf32, #tpu.memory_space<vmem>>, vector<8x1xf32>,
    %c0_6 = arith.constant 0 : index
    %c0_7 = arith.constant 0 : index
    %9 = vector.load %arg3[%c0_6, %c0_7] : memref<8x1xf32, #tpu.memory_space<vmem>>, vector<8x1xf32>
    %10 = arith.mulf %3, %3 : vector<8x128xf32>
    %cst_8 = arith.constant dense<0.000000e+00> : vector<8xf32>
    %11 = vector.multi_reduction <add>, %10, %cst_8 [1] : vector<8x128xf32> to vector<8xf32>
    %12 = vector.shape_cast %11 : vector<8xf32> to vector<8x1xf32>
    %13 = arith.addf %9, %12 : vector<8x1xf32>
    %c0_9 = arith.constant 0 : index
    %c0_10 = arith.constant 0 : index
    %14 = vector.load %arg3[%c0_9, %c0_10] : memref<8x1xf32, #tpu.memory_space<vmem>>, vector<8x1xf32>
    tpu.vector_store %arg3[%c0_9, %c0_10], %13 {strides = array<i32>} : memref<8x1xf32, #tpu.memory_space<vmem>>, vector<8x1xf32>,
    return
  }
  func.func @transform_0(%arg0: i32) -> (i32, i32) {
    %c0_i32 = arith.constant 0 : i32
    %c0_i32_0 = arith.constant 0 : i32
    return %c0_i32, %arg0 : i32, i32
  }
  func.func @transform_1(%arg0: i32) -> (i32, i32) {
    %c0_i32 = arith.constant 0 : i32
    %c0_i32_0 = arith.constant 0 : i32
    %c0_i32_1 = arith.constant 0 : i32
    return %c0_i32, %c0_i32_0 : i32, i32
  }
  func.func @transform_2(%arg0: i32) -> (i32, i32) {
    %c0_i32 = arith.constant 0 : i32
    %c0_i32_0 = arith.constant 0 : i32
    %c0_i32_1 = arith.constant 0 : i32
    return %c0_i32, %c0_i32_0 : i32, i32
  }
}

</mosaic_0001>

<llo_original>
// kernel: tpu_custom_call.1
$region0: #{tpu_custom_call.1}
  #allocation0 [shape = 'u32[]', space=smem, size = 0x4, offset = 0x4, fixed_abs, tag = 'smem constant byte address 0x4 - core index']
  #allocation1 [shape = 'u32[144,128]{1,0:T(1,128)}', space=vmem, size = 0x12000, scoped, tag = 'internal scratch']
  %s0 = inlined_call_operand.hbm [shape: f32[8,128], index: 0, kind: input, shape index: {}]
  %s1 = inlined_call_operand.vmem [shape: f32[8,1], index: 1, kind: output, shape index: {0}]
  %s2 = inlined_call_operand.vmem [shape: f32[8,1], index: 2, kind: output, shape index: {1}]
  %3 = xla_tuple %s1, %s2
  %s4 = sld [smem:[#allocation0]]
  $region30: #{tpu_custom_call.1} parent=0
    _
  %s6 = ssub.s32 1, %s4
  %s7 = scalar_select 0, %s6, %s4
  $region1: #{tpu_custom_call.1} parent=0
    #allocation2 [shape = 'u8[4096]{0}', space=vmem, size = 0x1000, scoped, tag = 'input window, operand 0, single buffered']
    #allocation3 [shape = 's32[1]{0}', space=sflag, size = 0x4, scoped, tag = 'scoped memory for tpu_custom_call.1']
    %8 = vsyncpa [#allocation3], 0
    // Predicated region
    $region2: #{tpu_custom_call.1} parent=1 // pred_check
      _
    $region3: #{tpu_custom_call.1} parent=1 // pred_check_branch
      %10 = sbr.rel (0) target = $region5
    $region4: #{tpu_custom_call.1} parent=1 // pred_region
      %s12 = ssub.s32 128, 128
      %13 = vsyncadd [#allocation3], %s12
      %s15 = sshll.u32 [#allocation2], 4
      %s16 = int_to_ptr.vmem [resolvable:$true] %s15
      %18 = dma.hbm_to_vmem [thread:$0]  %s0, 128, %s16, [#allocation3]
    $region5: #{tpu_custom_call.1} parent=1 // pred_fallthru
      _
    // Predicated region
    $region6: #{tpu_custom_call.1} parent=1 // pred_check
      _
    $region7: #{tpu_custom_call.1} parent=1 // pred_check_branch
      %20 = sbr.rel (0) target = $region9
    $region8: #{tpu_custom_call.1} parent=1 // pred_region
      %21 = dma.done [#allocation3], 128
    $region9: #{tpu_custom_call.1} parent=1 // pred_fallthru
      _
    %p22 = scmp.eq.s32.totalorder 0, 0
    // Predicated region
    $region10: #{tpu_custom_call.1} parent=1 // pred_check
      %p23 = pneg %p22
    $region11: #{tpu_custom_call.1} parent=1 // pred_check_branch
      %25 = sbr.rel (%p23) target = $region13
    $region12: #{tpu_custom_call.1} parent=1 // pred_region
      %vm26 = vcmask 7168
      %27 = vst.msk [vmem:[%s1] sm:$0xff] %vm26, 0.0
      %28 = vst.msk [vmem:[%s2] sm:$0xff] %vm26, 0.0
    $region13: #{tpu_custom_call.1} parent=1 // pred_fallthru
      _
    %v29 = vld [vmem:[#allocation2] sm:$0xff]
    %v30 = vld [vmem:[%s1] sm:$0xff]
    %31 = vadd.xlane.f32.xlu0 %v29
    %v32 = vpop.xlane.xlu0 %31
    %v33 = vadd.f32 %v30, %v32
    %vm34 = vcmask 7168
    %35 = vst.msk [vmem:[%s1] sm:$0xff] %vm34, %v33
    %v36 = vld [vmem:[%s2] sm:$0xff]
    %v37 = vmul.f32 %v29, %v29
    %38 = vadd.xlane.f32.xlu0 %v37
    %v39 = vpop.xlane.xlu0 %38
    %v40 = vadd.f32 %v36, %v39
    %41 = vst.msk [vmem:[%s2] sm:$0xff] %vm34, %v40
    // Predicated region
    $region14: #{tpu_custom_call.1} parent=1 // pred_check
      _
    $region15: #{tpu_custom_call.1} parent=1 // pred_check_branch
      %43 = sbr.rel (0) target = $region17
    $region16: #{tpu_custom_call.1} parent=1 // pred_region
      _
    $region17: #{tpu_custom_call.1} parent=1 // pred_fallthru
      _
    // Predicated region
    $region18: #{tpu_custom_call.1} parent=1 // pred_check
      _
    $region19: #{tpu_custom_call.1} parent=1 // pred_check_branch
      %45 = sbr.rel (0) target = $region21
    $region20: #{tpu_custom_call.1} parent=1 // pred_region
      _
    $region21: #{tpu_custom_call.1} parent=1 // pred_fallthru
      _
    // Predicated region
    $region22: #{tpu_custom_call.1} parent=1 // pred_check
      _
    $region23: #{tpu_custom_call.1} parent=1 // pred_check_branch
      %47 = sbr.rel (0) target = $region25
    $region24: #{tpu_custom_call.1} parent=1 // pred_region
      _
    $region25: #{tpu_custom_call.1} parent=1 // pred_fallthru
      _
    // Predicated region
    $region26: #{tpu_custom_call.1} parent=1 // pred_check
      _
    $region27: #{tpu_custom_call.1} parent=1 // pred_check_branch
      %49 = sbr.rel (0) target = $region29
    $region28: #{tpu_custom_call.1} parent=1 // pred_region
      _
    $region29: #{tpu_custom_call.1} parent=1 // pred_fallthru
      _
    %50 = vsyncpa [#allocation3], 1

</llo_original>
